<compile_context>
chip_gen: v6e
topology: v6e:2x2x1
jax: 0.10.0
libtpu: 0.0.40
codegen_flags: <defaults>
</compile_context>

<pallas_src>
import math
from functools import partial

import jax
import jax.numpy as jnp
from jax.experimental import pallas as pl
from jax.experimental.pallas import tpu as pltpu

_LANE = 128
_INT8_SUBLANE = 32            # int8 native tile is (32, 128)
_MIN_SPLIT_ROWS = 512         # never pipeline with tiles smaller than this
_MAX_BLOCK_ROWS = 1024        # bandwidth plateau; keeps VMEM tiny everywhere
_SQRT2 = math.sqrt(2.0)
_INV_SQRT2 = 1.0 / math.sqrt(2.0)
_NEG_HALF_LOG_2PI = -0.5 * math.log(2.0 * math.pi)


def _cdiv(a, b):
    return -(-a // b)


def _round_up(x, m):
    return ((x + m - 1) // m) * m


# ---------------------------------------------------------------------------
# Kernel factory: per-block masked log-likelihood terms + sublane reduction.
# Each grid step produces a lane-dense (1, 128) partial sum; the final 128-lane
# reduction and the division by N happen in the (jitted) glue.
# ---------------------------------------------------------------------------
def _make_kernel(dist, n, block_rows, needs_tail_mask, num_blocks):
    block_elems = block_rows * _LANE

    def kernel(params_ref, t_ref, r_ref, o_ref):
        t = t_ref[...]
        observed_raw = r_ref[...] != 0        # risk stream is int8 {0, 1}

        def emit(valid):
            # `valid` is None for full blocks (no mask work at all).
            observed = (observed_raw if valid is None
                        else jnp.logical_and(observed_raw, valid))
            if dist == 'weibull':
                alpha = params_ref[0]
                lam = params_ref[1]
                log_lam = jnp.log(lam)
                log_ratio = jnp.log(t) - log_lam          # log(t/lam), no divide
                pow_ratio = jnp.exp(alpha * log_ratio)    # (t/lam) ** alpha
                hazard = (jnp.log(alpha) - log_lam
                          + (alpha - 1.0) * log_ratio - pow_ratio)
                surv = -pow_ratio
                term = jnp.where(observed, hazard, 0.0)
                term = term + (surv if valid is None
                               else jnp.where(valid, surv, 0.0))
            elif dist == 'exponential':
                lam = params_ref[0]
                ratio = t / lam
                hazard = -jnp.log(lam) - ratio            # log(1/lam) - t/lam
                surv = -ratio
                term = jnp.where(observed, hazard, 0.0)
                term = term + (surv if valid is None
                               else jnp.where(valid, surv, 0.0))
            else:  # gaussian
                mean = params_ref[0]
                std = params_ref[1]
                diff = (t - mean) / std
                surv = (0.5 * (1.0 + jax.lax.erf(diff * _INV_SQRT2))
                        * (1.0 - 2.0 * 1e-6) + 1e-6)
                loglik = (_NEG_HALF_LOG_2PI - jnp.log(std)) - 0.5 * diff * diff
                term = jnp.where(observed, loglik, surv)
                if valid is not None:
                    # keep a SELECT (not a multiply) so padded-lane NaN/Inf
                    # can never propagate into the sum.
                    term = jnp.where(valid, term, 0.0)
            # Per-block partial sum, lane-dense (1, 128).
            o_ref[...] = jnp.sum(term, axis=0, keepdims=True)

        def tail_valid(i):
            row = jax.lax.broadcasted_iota(jnp.int32, (block_rows, _LANE), 0)
            lane = jax.lax.broadcasted_iota(jnp.int32, (block_rows, _LANE), 1)
            flat = i * block_elems + row * _LANE + lane
            return flat < n

        if not needs_tail_mask:
            emit(None)                       # batch exactly fills the tiles
        elif num_blocks == 1:
            emit(tail_valid(0))              # single ragged block
        else:
            i = pl.program_id(0)
            last = pl.num_programs(0) - 1

            @pl.when(i != last)              # full blocks: fast path, no mask
            def _():
                emit(None)

            @pl.when(i == last)              # only the tail block is ragged
            def _():
                emit(tail_valid(i))

    return kernel


# ---------------------------------------------------------------------------
# Jitted glue + pallas_call (shapes / grid parameters are static).
# ---------------------------------------------------------------------------
@partial(jax.jit, static_argnums=(0, 1, 2, 3, 4, 5))
def _loss_impl(dist, n_params, n, block_rows, rows_pad, num_blocks,
               inputs, targets, risk):
    npad = rows_pad * _LANE
    pad = npad - n

    # Lane-dense slabs.  With allow_input_fusion below these transpose / pad /
    # reshape producers may fuse into the pallas call instead of materializing
    # padded copies in HBM.
    params = jnp.transpose(inputs[:, :n_params].astype(jnp.float32))   # (P, N)
    params = jnp.pad(params, ((0, 0), (0, pad)), constant_values=1.0)
    params = params.reshape(n_params, rows_pad, _LANE)

    t = jnp.reshape(targets.astype(jnp.float32), (-1,))
    t = jnp.pad(t, (0, pad), constant_values=1.0).reshape(rows_pad, _LANE)

    # Risk travels as int8 (4x less HBM traffic than f32 for this stream).
    r = (jnp.reshape(risk, (-1,)) == 1).astype(jnp.int8)
    r = jnp.pad(r, (0, pad), constant_values=0).reshape(rows_pad, _LANE)

    cost = pl.CostEstimate(
        flops=16 * npad,
        transcendentals=4 * npad,
        bytes_accessed=npad * (4 * n_params + 4 + 1) + num_blocks * _LANE * 4)

    kernel = _make_kernel(dist, n, block_rows, npad != n, num_blocks)
    partials = pl.pallas_call(
        kernel,
        out_shape=jax.ShapeDtypeStruct((num_blocks, _LANE), jnp.float32),
        grid_spec=pltpu.PrefetchScalarGridSpec(
            num_scalar_prefetch=0,
            grid=(num_blocks,),
            in_specs=[
                pl.BlockSpec((n_params, block_rows, _LANE),
                             lambda i: (0, i, 0)),
                pl.BlockSpec((block_rows, _LANE), lambda i: (i, 0)),
                pl.BlockSpec((block_rows, _LANE), lambda i: (i, 0)),
            ],
            out_specs=pl.BlockSpec((1, _LANE), lambda i: (i, 0)),
        ),
        compiler_params=pltpu.CompilerParams(
            dimension_semantics=("parallel",),
            allow_input_fusion=[True, True, True]),
        cost_estimate=cost,
    )(params, t, r)

    return -jnp.sum(partials) / n


# ---------------------------------------------------------------------------
# Public wrapper.
# ---------------------------------------------------------------------------
def log_likelihood_loss_with_censoring(dist_type, inputs, targets, risk):
    dist = dist_type[0]
    if dist == 'poisson':
        # TODO(synk): poisson branch uses a data-dependent per-sample Python
        # loop (sum over j up to int(target[i])); no clean static Pallas map.
        raise NotImplementedError('poisson branch not implemented as a Pallas kernel')
    if dist not in ('weibull', 'exponential', 'gaussian'):
        raise RuntimeError('Unknown time distribution to compute loss')

    inputs = jnp.asarray(inputs)
    targets = jnp.asarray(targets)
    risk = jnp.asarray(risk)

    n = inputs.shape[0]
    n_params = 1 if dist == 'exponential' else 2

    # Lane-dense tiling.  Tiles are multiples of 32 rows (int8 tiling of the
    # risk stream); multi-block runs use 512-1024 row tiles (near the HBM
    # roofline) and large batches get >= ~4 grid blocks so both v7x
    # TensorCores and the DMA pipeline stay busy.
    rows_needed = max(1, _cdiv(n, _LANE))
    if rows_needed <= _MIN_SPLIT_ROWS:
        block_rows = _round_up(rows_needed, _INT8_SUBLANE)
    else:
        block_rows = min(_MAX_BLOCK_ROWS,
                         max(_MIN_SPLIT_ROWS,
                             _round_up(_cdiv(rows_needed, 4), _INT8_SUBLANE)))
    rows_pad = _round_up(rows_needed, block_rows)
    num_blocks = rows_pad // block_rows

    return _loss_impl(dist, n_params, n, block_rows, rows_pad, num_blocks,
                      inputs, targets, risk)


# ---------------------------------------------------------------------------
# Pure-JAX reference (mirrors the PyTorch forward exactly)
# ---------------------------------------------------------------------------
def _ref_loss(dist_type, inputs, targets, risk):
    t = jnp.squeeze(jnp.asarray(targets, jnp.float32))
    r = jnp.squeeze(jnp.asarray(risk, jnp.float32))
    inputs = jnp.asarray(inputs, jnp.float32)
    if dist_type[0] == 'weibull':
        alpha, lam = inputs[:, 0], inputs[:, 1]
        surv = -(t / lam) ** alpha
        hazard = (jnp.log(alpha / lam) + (alpha - 1.0) * jnp.log(t / lam)
                  - (t / lam) ** alpha)
        loss = -jnp.sum(jnp.where(r == 1, hazard, 0.0)) - jnp.sum(surv)
    elif dist_type[0] == 'exponential':
        lam = inputs[:, 0]
        surv = -(t / lam)
        hazard = jnp.log(1.0 / lam) - t / lam
        loss = -jnp.sum(jnp.where(r == 1, hazard, 0.0)) - jnp.sum(surv)
    elif dist_type[0] == 'gaussian':
        mean, std = inputs[:, 0], inputs[:, 1]
        surv = (0.5 * (1.0 + jax.lax.erf((t - mean) / (std * _SQRT2)))
                * (1.0 - 2e-6) + 1e-6)
        loglik = (-0.5 * jnp.log(2 * jnp.pi * std ** 2)
                  - (t - mean) ** 2 / (2 * std ** 2))
        loss = -jnp.sum(jnp.where(r == 1, loglik, surv))
    else:
        raise RuntimeError('Unknown time distribution to compute loss')
    return loss / inputs.shape[0]


if __name__ == "__main__":
    key = jax.random.PRNGKey(0)
    k1, k2, k3, k4, k5, k6 = jax.random.split(key, 6)

    # Small batch (single grid block, ragged tail).
    n = 8
    params2 = 0.5 + jnp.abs(jax.random.normal(k1, (n, 2), dtype=jnp.float32))
    targets = 0.5 + jnp.abs(jax.random.normal(k2, (n, 1), dtype=jnp.float32))
    risk = (jax.random.uniform(k3, (n,)) > 0.5).astype(jnp.float32)

    checks = [
        (('weibull',), params2),
        (('exponential',), params2[:, :1]),
        (('gaussian',), params2),
    ]
    for dist_type, inputs in checks:
        got = jax.block_until_ready(
            log_likelihood_loss_with_censoring(dist_type, inputs, targets, risk))
        want = jax.block_until_ready(_ref_loss(dist_type, inputs, targets, risk))
        assert jnp.allclose(got, want, rtol=1e-4, atol=1e-4), (dist_type, got, want)

    # Batch large enough to exercise the multi-block path (tail-masked last
    # block, full-block fast path, >=2 grid steps) under the default tiling.
    n2 = 70_000
    params2b = 0.5 + jnp.abs(jax.random.normal(k4, (n2, 2), dtype=jnp.float32))
    targetsb = 0.5 + jnp.abs(jax.random.normal(k5, (n2, 1), dtype=jnp.float32))
    riskb = (jax.random.uniform(k6, (n2,)) > 0.5).astype(jnp.float32)
    for dist_type, inputsb in [(('weibull',), params2b),
                               (('exponential',), params2b[:, :1]),
                               (('gaussian',), params2b)]:
        got = jax.block_until_ready(
            log_likelihood_loss_with_censoring(dist_type, inputsb, targetsb, riskb))
        want = jax.block_until_ready(_ref_loss(dist_type, inputsb, targetsb, riskb))
        assert jnp.allclose(got, want, rtol=1e-3, atol=1e-3), (dist_type, got, want)

    print("KERNEL_OK")
</pallas_src>

<mosaic_0001>
module attributes {stable_mosaic.version = 11 : i64} {
  func.func @kernel(%arg0: i32, %arg1: memref<2x32x128xf32, #tpu.memory_space<vmem>>, %arg2: memref<32x128xf32, #tpu.memory_space<vmem>>, %arg3: memref<32x128xi8, #tpu.memory_space<vmem>>, %arg4: memref<1x128xf32, #tpu.memory_space<vmem>>) attributes {dimension_semantics = [#tpu.dimension_semantics<parallel>], iteration_bounds = array<i64: 1>, scalar_prefetch = 0 : i64, scratch_operands = 0 : i64, tpu.core_type = #tpu.core_type<tc>, window_params = [{transform_indices = @transform_0, window_bounds = array<i64: 2, 32, 128>}, {transform_indices = @transform_1, window_bounds = array<i64: 32, 128>}, {transform_indices = @transform_2, window_bounds = array<i64: 32, 128>}, {transform_indices = @transform_3, window_bounds = array<i64: 1, 128>}]} {
    %c0 = arith.constant 0 : index
    %c0_0 = arith.constant 0 : index
    %0 = vector.load %arg2[%c0, %c0_0] : memref<32x128xf32, #tpu.memory_space<vmem>>, vector<32x128xf32>
    %c0_1 = arith.constant 0 : index
    %c0_2 = arith.constant 0 : index
    %1 = vector.load %arg3[%c0_1, %c0_2] : memref<32x128xi8, #tpu.memory_space<vmem>>, vector<32x128xi8>
    %c0_i8 = arith.constant 0 : i8
    %2 = vector.broadcast %c0_i8 : i8 to vector<32x128xi8>
    %3 = arith.cmpi ne, %1, %2 : vector<32x128xi8>
    %4 = tpu.iota {dimensions = array<i32: 0>} : vector<32x128xi32>
    %5 = tpu.iota {dimensions = array<i32: 1>} : vector<32x128xi32>
    %c128_i32 = arith.constant 128 : i32
    %6 = vector.broadcast %c128_i32 : i32 to vector<32x128xi32>
    %7 = arith.muli %4, %6 : vector<32x128xi32>
    %c0_i32 = arith.constant 0 : i32
    %8 = vector.broadcast %c0_i32 : i32 to vector<32x128xi32>
    %9 = arith.addi %8, %7 : vector<32x128xi32>
    %10 = arith.addi %9, %5 : vector<32x128xi32>
    %c8_i32 = arith.constant 8 : i32
    %11 = vector.broadcast %c8_i32 : i32 to vector<32x128xi32>
    %12 = arith.cmpi slt, %10, %11 : vector<32x128xi32>
    %13 = arith.andi %3, %12 : vector<32x128xi1>
    %c0_3 = arith.constant 0 : index
    %c0_4 = arith.constant 0 : index
    %c0_5 = arith.constant 0 : index
    %14 = vector.load %arg1[%c0_3, %c0_4, %c0_5] : memref<2x32x128xf32, #tpu.memory_space<vmem>>, vector<1x32x128xf32>
    %15 = vector.shape_cast %14 : vector<1x32x128xf32> to vector<32x128xf32>
    %c1 = arith.constant 1 : index
    %c0_6 = arith.constant 0 : index
    %c0_7 = arith.constant 0 : index
    %16 = vector.load %arg1[%c1, %c0_6, %c0_7] : memref<2x32x128xf32, #tpu.memory_space<vmem>>, vector<1x32x128xf32>
    %17 = vector.shape_cast %16 : vector<1x32x128xf32> to vector<32x128xf32>
    %18 = math.log %17 : vector<32x128xf32>
    %19 = math.log %0 : vector<32x128xf32>
    %20 = arith.subf %19, %18 : vector<32x128xf32>
    %21 = arith.mulf %15, %20 : vector<32x128xf32>
    %22 = math.exp %21 : vector<32x128xf32>
    %23 = math.log %15 : vector<32x128xf32>
    %24 = arith.subf %23, %18 : vector<32x128xf32>
    %cst = arith.constant 1.000000e+00 : f32
    %25 = vector.broadcast %cst : f32 to vector<32x128xf32>
    %26 = arith.subf %15, %25 : vector<32x128xf32>
    %27 = arith.mulf %26, %20 : vector<32x128xf32>
    %28 = arith.addf %24, %27 : vector<32x128xf32>
    %29 = arith.subf %28, %22 : vector<32x128xf32>
    %cst_8 = arith.constant 0.000000e+00 : f32
    %30 = vector.broadcast %cst_8 : f32 to vector<32x128xf32>
    %31 = arith.subf %30, %22 : vector<32x128xf32>
    %cst_9 = arith.constant 0.000000e+00 : f32
    %32 = vector.broadcast %cst_9 : f32 to vector<32x128xf32>
    %33 = arith.select %13, %29, %32 : vector<32x128xi1>, vector<32x128xf32>
    %cst_10 = arith.constant 0.000000e+00 : f32
    %34 = vector.broadcast %cst_10 : f32 to vector<32x128xf32>
    %35 = arith.select %12, %31, %34 : vector<32x128xi1>, vector<32x128xf32>
    %36 = arith.addf %33, %35 : vector<32x128xf32>
    %cst_11 = arith.constant dense<0.000000e+00> : vector<128xf32>
    %37 = vector.multi_reduction <add>, %36, %cst_11 [0] : vector<32x128xf32> to vector<128xf32>
    %38 = vector.shape_cast %37 : vector<128xf32> to vector<1x128xf32>
    %c0_12 = arith.constant 0 : index
    %c0_13 = arith.constant 0 : index
    %39 = vector.load %arg4[%c0_12, %c0_13] : memref<1x128xf32, #tpu.memory_space<vmem>>, vector<1x128xf32>
    tpu.vector_store %arg4[%c0_12, %c0_13], %38 {strides = array<i32>} : memref<1x128xf32, #tpu.memory_space<vmem>>, vector<1x128xf32>,
    return
  }
  func.func @transform_0(%arg0: i32) -> (i32, i32, i32) {
    %c0_i32 = arith.constant 0 : i32
    %c0_i32_0 = arith.constant 0 : i32
    %c0_i32_1 = arith.constant 0 : i32
    return %c0_i32, %arg0, %c0_i32_0 : i32, i32, i32
  }
  func.func @transform_1(%arg0: i32) -> (i32, i32) {
    %c0_i32 = arith.constant 0 : i32
    %c0_i32_0 = arith.constant 0 : i32
    return %arg0, %c0_i32 : i32, i32
  }
  func.func @transform_2(%arg0: i32) -> (i32, i32) {
    %c0_i32 = arith.constant 0 : i32
    %c0_i32_0 = arith.constant 0 : i32
    return %arg0, %c0_i32 : i32, i32
  }
  func.func @transform_3(%arg0: i32) -> (i32, i32) {
    %c0_i32 = arith.constant 0 : i32
    %c0_i32_0 = arith.constant 0 : i32
    return %arg0, %c0_i32 : i32, i32
  }
}

</mosaic_0001>

<llo_original>
// kernel: _loss_impl.2
$region0: #{_loss_impl.2}
  #allocation0 [shape = 'u32[]', space=smem, size = 0x4, offset = 0x4, fixed_abs, tag = 'smem constant byte address 0x4 - core index']
  #allocation1 [shape = 'u32[144,128]{1,0:T(1,128)}', space=vmem, size = 0x12000, scoped, tag = 'internal scratch']
  #allocation2 [shape = 'u32[2048]{0}', space=vmem, size = 0x2000, scoped, tag = 'scoped memory for _loss_impl.2']
  #allocation3 [shape = 'u32[2048]{0}', space=vmem, size = 0x2000, scoped, tag = 'scoped memory for _loss_impl.2']
  #allocation4 [shape = 'u32[2048]{0}', space=vmem, size = 0x2000, scoped, tag = 'scoped memory for _loss_impl.2']
  #allocation5 [shape = 'u32[2048]{0}', space=vmem, size = 0x2000, scoped, tag = 'scoped memory for _loss_impl.2']
  #allocation6 [shape = 'u32[2048]{0}', space=vmem, size = 0x2000, scoped, tag = 'scoped memory for _loss_impl.2']
  #allocation7 [shape = 'u32[2048]{0}', space=vmem, size = 0x2000, scoped, tag = 'scoped memory for _loss_impl.2']
  #allocation8 [shape = 'u32[2048]{0}', space=vmem, size = 0x2000, scoped, tag = 'scoped memory for _loss_impl.2']
  #allocation9 [shape = 'u32[2048]{0}', space=vmem, size = 0x2000, scoped, tag = 'scoped memory for _loss_impl.2']
  #allocation10 [shape = 'u32[2048]{0}', space=vmem, size = 0x2000, scoped, tag = 'scoped memory for _loss_impl.2']
  #allocation11 [shape = 'u32[2048]{0}', space=vmem, size = 0x2000, scoped, tag = 'scoped memory for _loss_impl.2']
  %s0 = inlined_call_operand.vmem [shape: f32[1,2,32,128], index: 0, kind: input, shape index: {}]
  %s1 = inlined_call_operand.vmem [shape: f32[8], index: 1, kind: input, shape index: {}]
  %s2 = inlined_call_operand.<no memory space> [shape: f32[], index: 2, kind: input, shape index: {}]
  %s3 = inlined_call_operand.vmem [shape: pred[8], index: 3, kind: input, shape index: {}]
  %s4 = inlined_call_operand.<no memory space> [shape: pred[], index: 4, kind: input, shape index: {}]
  %s5 = inlined_call_operand.vmem [shape: f32[1,128], index: 5, kind: output, shape index: {}]
  %s6 = sld [smem:[#allocation0]]
  $region22: #{_loss_impl.2} parent=0
    _
  %s8 = ssub.s32 1, %s6
  %s9 = scalar_select 0, %s8, %s6
  %v10 = vstv %s2
  %v11 = vstv %s4
  %v13 = vshra.s32 %v11, 0
  %v14 = vand.u32 %v13, 255
  $region1: #{_loss_impl.2} parent=0
    #allocation12 [shape = 'u8[32768]{0}', space=vmem, size = 0x8000, dematerialized = true, scoped, tag = 'FusionAdapter Buffer %fusion.1 = f32[2,32,128]{2,1,0:T(8,128)} fusion(%param_0.17), kind=kLoop, calls=%fused_computation.1.clone, metadata={op_name="jit(_loss_impl)/reshape" stack_frame_id=11}']
    #allocation13 [shape = 'u8[16384]{0}', space=vmem, size = 0x4000, dematerialized = true, scoped, tag = 'FusionAdapter Buffer %fusion.2 = f32[32,128]{1,0:T(8,128)} fusion(%param_1.11, %param_2.4), kind=kLoop, calls=%fused_computation.3.clone, metadata={op_name="jit(_loss_impl)/reshape" stack_frame_id=14}']
    #allocation14 [shape = 'u8[4096]{0}', space=vmem, size = 0x1000, dematerialized = true, scoped, tag = 'FusionAdapter Buffer %fusion.5 = s8[32,128]{1,0:T(8,128)(4,1)} fusion(%param_3.1, %param_4), kind=kLoop, calls=%fused_computation.6.clone.clone, metadata={op_name="jit(_loss_impl)/reshape" stack_frame_id=18}']
    // Predicated region
    $region2: #{_loss_impl.2} parent=1 // pred_check
      _
    $region3: #{_loss_impl.2} parent=1 // pred_check_branch
      %16 = sbr.rel (0) target = $region5
    $region4: #{_loss_impl.2} parent=1 // pred_region
      _
    $region5: #{_loss_impl.2} parent=1 // pred_fallthru
      _
    // Predicated region
    $region6: #{_loss_impl.2} parent=1 // pred_check
      _
    $region7: #{_loss_impl.2} parent=1 // pred_check_branch
      %18 = sbr.rel (0) target = $region9
    $region8: #{_loss_impl.2} parent=1 // pred_region
      _
    $region9: #{_loss_impl.2} parent=1 // pred_fallthru
      _
    // Predicated region
    $region10: #{_loss_impl.2} parent=1 // pred_check
      _
    $region11: #{_loss_impl.2} parent=1 // pred_check_branch
      %20 = sbr.rel (0) target = $region13
    $region12: #{_loss_impl.2} parent=1 // pred_region
      _
    $region13: #{_loss_impl.2} parent=1 // pred_fallthru
      _
    %v21 = vld [vmem:[%s0] sm:$0xff]
    %s23 = ssub.s32 256, 1
    %24 = vst [vmem:[#allocation12] sm:%s23] %v21
    %s25 = scalar_lea.vmem %s0, 8
    %v26 = vld [vmem:[%s25] sm:$0xff]
    %s27 = scalar_lea.vmem [#allocation12], 8
    %s29 = ssub.s32 256, 1
    %30 = vst [vmem:[%s27] sm:%s29] %v26
    %s31 = scalar_lea.vmem %s0, 16
    %v32 = vld [vmem:[%s31] sm:$0xff]
    %s33 = scalar_lea.vmem [#allocation12], 16
    %s35 = ssub.s32 256, 1
    %36 = vst [vmem:[%s33] sm:%s35] %v32
    %s37 = scalar_lea.vmem %s0, 24
    %v38 = vld [vmem:[%s37] sm:$0xff]
    %s39 = scalar_lea.vmem [#allocation12], 24
    %s41 = ssub.s32 256, 1
    %42 = vst [vmem:[%s39] sm:%s41] %v38
    %s43 = scalar_lea.vmem %s0, 32
    %v44 = vld [vmem:[%s43] sm:$0xff]
    %s45 = scalar_lea.vmem [#allocation12], 32
    %s47 = ssub.s32 256, 1
    %48 = vst [vmem:[%s45] sm:%s47] %v44
    %s49 = scalar_lea.vmem %s0, 40
    %v50 = vld [vmem:[%s49] sm:$0xff]
    %s51 = scalar_lea.vmem [#allocation12], 40
    %s53 = ssub.s32 256, 1
    %54 = vst [vmem:[%s51] sm:%s53] %v50
    %s55 = scalar_lea.vmem %s0, 48
    %v56 = vld [vmem:[%s55] sm:$0xff]
    %s57 = scalar_lea.vmem [#allocation12], 48
    %s59 = ssub.s32 256, 1
    %60 = vst [vmem:[%s57] sm:%s59] %v56
    %s61 = scalar_lea.vmem %s0, 56
    %v62 = vld [vmem:[%s61] sm:$0xff]
    %s63 = scalar_lea.vmem [#allocation12], 56
    %s65 = ssub.s32 256, 1
    %66 = vst [vmem:[%s63] sm:%s65] %v62
    %v67 = vld [vmem:[%s1] sm:$0x1]
    %v68 = vlaneseq
    %vm70 = vcmp.lt.s32.totalorder %v68, 8
    %v71 = vsel %vm70, %v67, %v10
    %s73 = ssub.s32 256, 1
    %74 = vst [vmem:[#allocation13] sm:%s73] %v71
    %s75 = scalar_lea.vmem [#allocation13], 8
    %s77 = ssub.s32 256, 1
    %78 = vst [vmem:[%s75] sm:%s77] %v10
    %s79 = scalar_lea.vmem [#allocation13], 16
    %s81 = ssub.s32 256, 1
    %82 = vst [vmem:[%s79] sm:%s81] %v10
    %s83 = scalar_lea.vmem [#allocation13], 24
    %s85 = ssub.s32 256, 1
    %86 = vst [vmem:[%s83] sm:%s85] %v10
    %v87 = vld [vmem:[%s3] ss:$0 sm:$0xf]
    %v88 = vunpack.c.0.s8 %v87
    %v89 = vunpack.c.1.s8 %v87
    %v90 = vunpack.c.2.s8 %v87
    %v91 = vunpack.c.3.s8 %v87
    %v92 = vlaneseq
    %vm94 = vcmp.lt.s32.totalorder %v92, 8
    %v95 = vsel %vm94, %v88, %v14
    %96 = xla_tuple %v95
    %97 = xla_tuple %96
    %98 = xla_tuple %v95
    %s100 = ssub.s32 4, 1
    %v101 = vpack.c.b16 0, %v95
    %v102 = vpack.c.b8 0, %v101
    %103 = vst [vmem:[#allocation14] sm:%s100] %v102
    %104 = xla_tuple %v14
    %105 = xla_tuple %104
    %106 = xla_tuple %v14
    %s107 = scalar_lea.vmem [#allocation14], 2
    %s109 = ssub.s32 4, 1
    %v110 = vpack.c.b16 0, %v14
    %v111 = vpack.c.b8 0, %v110
    %112 = vst [vmem:[%s107] sm:%s109] %v111
    %113 = xla_tuple %v14
    %114 = xla_tuple %113
    %115 = xla_tuple %v14
    %s116 = scalar_lea.vmem [#allocation14], 4
    %s118 = ssub.s32 4, 1
    %v119 = vpack.c.b16 0, %v14
    %v120 = vpack.c.b8 0, %v119
    %121 = vst [vmem:[%s116] sm:%s118] %v120
    %122 = xla_tuple %v14
    %123 = xla_tuple %122
    %124 = xla_tuple %v14
    %s125 = scalar_lea.vmem [#allocation14], 6
    %s127 = ssub.s32 4, 1
    %v128 = vpack.c.b16 0, %v14
    %v129 = vpack.c.b8 0, %v128
    %130 = vst [vmem:[%s125] sm:%s127] %v129
    %v133 = vld [vmem:[#allocation13] sm:$0xff]
    %v134 = vld [vmem:[#allocation13 + $0x8] sm:$0xff]
    %v135 = vld [vmem:[#allocation13 + $0x10] sm:$0xff]
    %v136 = vld [vmem:[#allocation13 + $0x18] sm:$0xff]
    %v137 = vld [vmem:[#allocation14] sm:$0x3]
    %v138 = vld [vmem:[#allocation14 + $0x2] sm:$0x3]
    %v139 = vld [vmem:[#allocation14 + $0x4] sm:$0x3]
    %v140 = vld [vmem:[#allocation14 + $0x6] sm:$0x3]
    %vm141 = vnez %v137
    %vm142 = vnez %v138
    %vm143 = vnez %v139
    %vm144 = vnez %v140
    %v145 = vlaneseq
    %v146 = vshrl.u32 %v145, 7
    %v147 = vadd.s32 %v146, 8
    %v148 = vadd.s32 %v146, 16
    %v149 = vadd.s32 %v146, 24
    %v150 = vlaneseq
    %v151 = vand.u32 %v150, 127
    %v152 = vmul.u32 %v146, 128
    %v153 = vmul.u32 %v147, 128
    %v154 = vmul.u32 %v148, 128
    %v155 = vmul.u32 %v149, 128
    %v156 = vadd.s32 %v152, %v151
    %v157 = vadd.s32 %v153, %v151
    %v158 = vadd.s32 %v154, %v151
    %v159 = vadd.s32 %v155, %v151
    %vm160 = vcmp.lt.s32.totalorder %v156, 8
    %vm161 = vcmp.lt.s32.totalorder %v157, 8
    %vm162 = vcmp.lt.s32.totalorder %v158, 8
    %vm163 = vcmp.lt.s32.totalorder %v159, 8
    %vm164 = vmpackc.low %vm160, %vm160
    %vm165 = vmpackc.even %vm164, %vm164
    %vm166 = vmpackc.low %vm161, %vm161
    %vm167 = vmpackc.even %vm166, %vm166
    %vm168 = vmpackc.low %vm162, %vm162
    %vm169 = vmpackc.even %vm168, %vm168
    %vm170 = vmpackc.low %vm163, %vm163
    %vm171 = vmpackc.even %vm170, %vm170
    %vm172 = vmand %vm141, %vm165
    %vm173 = vmand %vm142, %vm167
    %vm174 = vmand %vm143, %vm169
    %vm175 = vmand %vm144, %vm171
    %v176 = vld [vmem:[#allocation12] sm:$0xff]
    %v177 = vld [vmem:[#allocation12 + $0x8] sm:$0xff]
    %v178 = vld [vmem:[#allocation12 + $0x10] sm:$0xff]
    %v179 = vld [vmem:[#allocation12 + $0x18] sm:$0xff]
    %s180 = scalar_lea.vmem [#allocation12], 32
    %v181 = vld [vmem:[%s180] sm:$0xff]
    %v182 = vld [vmem:[%s180 + $0x8] sm:$0xff]
    %v183 = vld [vmem:[%s180 + $0x10] sm:$0xff]
    %v184 = vld [vmem:[%s180 + $0x18] sm:$0xff]
    %v185 = vlog2.pop %v181
    %v186 = vmul.f32 %v185, 0.6931472
    %v187 = vlog2.pop %v182
    %v188 = vmul.f32 %v187, 0.6931472
    %v189 = vlog2.pop %v183
    %v190 = vmul.f32 %v189, 0.6931472
    %v191 = vlog2.pop %v184
    %v192 = vmul.f32 %v191, 0.6931472
    %v193 = vlog2.pop %v133
    %v194 = vmul.f32 %v193, 0.6931472
    %v195 = vlog2.pop %v134
    %v196 = vmul.f32 %v195, 0.6931472
    %v197 = vlog2.pop %v135
    %v198 = vmul.f32 %v197, 0.6931472
    %v199 = vlog2.pop %v136
    %v200 = vmul.f32 %v199, 0.6931472
    %v201 = vsub.f32 %v194, %v186
    %v202 = vsub.f32 %v196, %v188
    %v203 = vsub.f32 %v198, %v190
    %v204 = vsub.f32 %v200, %v192
    %v205 = vmul.f32 %v176, %v201
    %v206 = vmul.f32 %v177, %v202
    %v207 = vmul.f32 %v178, %v203
    %v208 = vmul.f32 %v179, %v204
    %v209 = vmul.f32 %v205, 1.442695
    %v210 = vpow.pop %v209
    %v211 = vmul.f32 %v206, 1.442695
    %v212 = vpow.pop %v211
    %v213 = vmul.f32 %v207, 1.442695
    %v214 = vpow.pop %v213
    %v215 = vmul.f32 %v208, 1.442695
    %v216 = vpow.pop %v215
    %v217 = vlog2.pop %v176
    %v218 = vmul.f32 %v217, 0.6931472
    %v219 = vlog2.pop %v177
    %v220 = vmul.f32 %v219, 0.6931472
    %v221 = vlog2.pop %v178
    %v222 = vmul.f32 %v221, 0.6931472
    %v223 = vlog2.pop %v179
    %v224 = vmul.f32 %v223, 0.6931472
    %v225 = vsub.f32 %v218, %v186
    %v226 = vsub.f32 %v220, %v188
    %v227 = vsub.f32 %v222, %v190
    %v228 = vsub.f32 %v224, %v192
    %v229 = vsub.f32 %v176, 1.0
    %v230 = vsub.f32 %v177, 1.0
    %v231 = vsub.f32 %v178, 1.0
    %v232 = vsub.f32 %v179, 1.0
    %v233 = vmul.f32 %v229, %v201
    %v234 = vmul.f32 %v230, %v202
    %v235 = vmul.f32 %v231, %v203
    %v236 = vmul.f32 %v232, %v204
    %v237 = vadd.f32 %v225, %v233
    %v238 = vadd.f32 %v226, %v234
    %v239 = vadd.f32 %v227, %v235
    %v240 = vadd.f32 %v228, %v236
    %v241 = vsub.f32 %v237, %v210
    %v242 = vsub.f32 %v238, %v212
    %v243 = vsub.f32 %v239, %v214
    %v244 = vsub.f32 %v240, %v216
    %v245 = vsub.f32 0.0, %v210
    %v246 = vsub.f32 0.0, %v212
    %v247 = vsub.f32 0.0, %v214
    %v248 = vsub.f32 0.0, %v216
    %v249 = vsel %vm172, 16843009, 0
    %v250 = vsel %vm173, 16843009, 0
    %v251 = vsel %vm174, 16843009, 0
    %v252 = vsel %vm175, 16843009, 0
    %v253 = vunpack.c.0.s8 %v249
    %v254 = vunpack.c.0.s8 %v250
    %v255 = vunpack.c.0.s8 %v251
    %v256 = vunpack.c.0.s8 %v252
    %vm257 = vcmp.ne.s32.totalorder %v253, 0
    %vm258 = vcmp.ne.s32.totalorder %v254, 0
    %vm259 = vcmp.ne.s32.totalorder %v255, 0
    %vm260 = vcmp.ne.s32.totalorder %v256, 0
    %v261 = vsel %vm257, %v241, 0.0
    %v262 = vsel %vm258, %v242, 0.0
    %v263 = vsel %vm259, %v243, 0.0
    %v264 = vsel %vm260, %v244, 0.0
    %v265 = vsel %vm160, %v245, 0.0
    %v266 = vsel %vm161, %v246, 0.0
    %v267 = vsel %vm162, %v247, 0.0
    %v268 = vsel %vm163, %v248, 0.0
    %v269 = vadd.f32 %v261, %v265
    %v270 = vadd.f32 %v262, %v266
    %v271 = vadd.f32 %v263, %v267
    %v272 = vadd.f32 %v264, %v268
    %v273 = vadd.f32 %v269, %v270
    %v274 = vadd.f32 %v273, %v271
    %v275 = vadd.f32 %v274, %v272
    %v276 = vrot.slane %v275, 4
    %v277 = vadd.f32 %v275, %v276
    %v278 = vrot.slane %v277, 2
    %v279 = vadd.f32 %v277, %v278
    %v280 = vrot.slane %v279, 1
    %v281 = vadd.f32 %v279, %v280
    %282 = vst [vmem:[%s5] sm:$0x1] %v281
    // Predicated region
    $region14: #{_loss_impl.2} parent=1 // pred_check
      _
    $region15: #{_loss_impl.2} parent=1 // pred_check_branch
      %284 = sbr.rel (0) target = $region17
    $region16: #{_loss_impl.2} parent=1 // pred_region
      _
    $region17: #{_loss_impl.2} parent=1 // pred_fallthru
      _
    // Predicated region
    $region18: #{_loss_impl.2} parent=1 // pred_check
      _
    $region19: #{_loss_impl.2} parent=1 // pred_check_branch
      %286 = sbr.rel (0) target = $region21
    $region20: #{_loss_impl.2} parent=1 // pred_region
      _
    $region21: #{_loss_impl.2} parent=1 // pred_fallthru
      _

</llo_original>
